<compile_context>
chip_gen: v7x
topology: tpu7x:2x2x1
jax: 0.10.0
libtpu: 0.0.40
codegen_flags: <defaults>
</compile_context>

<pallas_src>
import functools

import jax
import jax.numpy as jnp
from jax import lax
from jax.experimental import pallas as pl
from jax.experimental.pallas import tpu as pltpu

# ---- model configuration (small, consistent with SingleStageModel.__init__) ----
NUM_LAYERS = 3      # dilations 1, 2, 4
NUM_F_MAPS = 32     # hidden channels
DIM = 8             # input channels
NUM_CLASSES = 4     # output channels
BATCH = 2
SEQ_LEN = 128       # B*T multiple of 128 -> lane-dense tiles and clean lane rolls


# ----------------------------- Pallas kernel --------------------------------
def _single_stage_kernel(x_ref, w_ref, o_ref, *, C, dim, L, n_cls, blk, seq_len):
    """x_ref: (dim, B*T) batch-folded input.  w_ref: packed weights/biases.
    o_ref: (n_cls, B*T) output."""
    cdtype = w_ref.dtype            # bf16 on v6e/v7x, f32 otherwise (see wrapper)
    total = x_ref.shape[1]          # B * T (batch folded onto the lane axis)
    boff = (2 * L + 1) * blk        # start of the bias block in the packed array

    # conv_1x1 input projection: (C, dim) @ (dim, B*T) + (C, 1)
    h = (jnp.dot(w_ref[:, 0:dim], x_ref[...], preferred_element_type=jnp.float32)
         + w_ref[:, boff:boff + 1].astype(jnp.float32))

    # Local time index along the lane axis: masks the rolled operands so the
    # dilated taps see zero padding and never bleed across the batch seam.
    local_t = lax.broadcasted_iota(jnp.int32, (C, total), 1) % seq_len

    for l in range(L):
        d = 2 ** l  # static dilation

        # zero-padded per-sequence shifts: x_left[:,t]=h[:,t-d], x_right[:,t]=h[:,t+d]
        x_left = jnp.where(local_t >= d, pltpu.roll(h, d, axis=1), 0.0)
        x_right = jnp.where(local_t < seq_len - d,
                            pltpu.roll(h, total - d, axis=1), 0.0)

        # fused kernel-size-3 dilated conv: one K=3C matmul instead of three K=C
        stacked = jnp.concatenate([x_left, h, x_right], axis=0).astype(cdtype)
        wd = w_ref[:, (1 + l) * blk:(1 + l) * blk + 3 * C]
        bd = w_ref[:, boff + 1 + l:boff + 2 + l].astype(jnp.float32)
        y = jnp.maximum(
            jnp.dot(wd, stacked, preferred_element_type=jnp.float32) + bd, 0.0)
        # dropout: eval-mode identity.
        # TODO(synk): training-mode dropout (pltpu.prng_seed/prng_random_bits mask)
        #             is not implemented in-kernel.

        if l < L - 1:
            # per-layer 1x1 conv
            w1 = w_ref[:, (1 + L + l) * blk:(1 + L + l) * blk + C]
            b1 = w_ref[:, boff + 1 + L + l:boff + 2 + L + l].astype(jnp.float32)
            h = jnp.dot(w1, y.astype(cdtype),
                        preferred_element_type=jnp.float32) + b1
        else:
            # last layer's 1x1 composed with conv_out at pack time (exact: no
            # residual add, dropout = identity); lane-dense (n_cls, B*T) store.
            wf = w_ref[0:n_cls, 2 * L * blk:2 * L * blk + C]
            bf = w_ref[0:n_cls, boff + 2 * L:boff + 2 * L + 1].astype(jnp.float32)
            o_ref[...] = (jnp.dot(wf, y.astype(cdtype),
                                  preferred_element_type=jnp.float32) + bf
                          ).astype(o_ref.dtype)


# --------------------------- one-time weight packing --------------------------
def pack_params(params, compute_dtype=jnp.float32):
    """Re-layout PyTorch-convention Conv1d weights into ONE packed matmul-form
    operand (single DMA instead of nine small ones).  Call once at init."""
    C, dim = params["w_in"].shape[0], params["w_in"].shape[1]
    L = params["wd"].shape[0]
    n_cls = params["w_out"].shape[0]
    assert dim <= C and n_cls <= C, "packing assumes dim, n_cls <= num_f_maps"

    w_in = params["w_in"][:, :, 0]                                      # (C, dim)
    # fuse the 3 taps of the dilated conv along Cin: (L, C, 3C) = [t-d | t | t+d]
    wd = jnp.concatenate([params["wd"][..., k] for k in range(3)], -1)
    w1 = params["w1"][..., 0]                                           # (L, C, C)
    w_out = params["w_out"][:, :, 0]                                    # (n_cls, C)

    # Compose the last layer's 1x1 with conv_out (exact: no residual, dropout=id).
    w_fused = w_out @ w1[L - 1]                                         # (n_cls, C)
    b_fused = w_out @ params["b1"][L - 1] + params["b_out"]             # (n_cls,)

    blk = ((3 * C + 127) // 128) * 128     # 128-lane-aligned column blocks
    n_blocks = 2 * L + 2                   # w_in | wd*L | w1*(L-1) | w_fused | biases
    packed = jnp.zeros((C, n_blocks * blk), jnp.float32)

    packed = packed.at[:, :dim].set(w_in)
    for l in range(L):
        packed = packed.at[:, (1 + l) * blk:(1 + l) * blk + 3 * C].set(wd[l])
    for l in range(L - 1):
        packed = packed.at[:, (1 + L + l) * blk:(1 + L + l) * blk + C].set(w1[l])
    packed = packed.at[:n_cls, 2 * L * blk:2 * L * blk + C].set(w_fused)

    boff = (2 * L + 1) * blk               # bias block: one lane per bias vector
    packed = packed.at[:, boff].set(params["b_in"])
    for l in range(L):
        packed = packed.at[:, boff + 1 + l].set(params["bd"][l])
    for l in range(L - 1):
        packed = packed.at[:, boff + 1 + L + l].set(params["b1"][l])
    packed = packed.at[:n_cls, boff + 2 * L].set(b_fused)

    meta = dict(C=C, dim=dim, L=L, n_cls=n_cls, blk=blk)
    return packed.astype(compute_dtype), meta


# ------------------------------- wrapper -------------------------------------
def single_stage_model_pallas(x_nct, packed, *, meta, compute_dtype=jnp.float32):
    """x_nct: (B, DIM, T) float32 (PyTorch NCT layout).  packed/meta from
    pack_params().  Returns (B, NUM_CLASSES, T) float32."""
    B, dim, T = x_nct.shape
    C, L, n_cls, blk = meta["C"], meta["L"], meta["n_cls"], meta["blk"]
    total = B * T
    assert total % 128 == 0, "batch-folded layout wants B*T to be a multiple of 128"

    # Fold batch into the lane axis: (B, dim, T) -> (dim, B*T).  Single grid
    # step; 256-lane matmul operands; one DMA per input.
    x2 = x_nct.transpose(1, 0, 2).reshape(dim, total).astype(compute_dtype)

    kernel = functools.partial(_single_stage_kernel, C=C, dim=dim, L=L,
                               n_cls=n_cls, blk=blk, seq_len=T)

    flops = 2 * total * C * (dim + 3 * C * L + C * (L - 1) + n_cls)
    bytes_accessed = (x2.size * x2.dtype.itemsize
                      + packed.size * packed.dtype.itemsize
                      + n_cls * total * 4)

    out2 = pl.pallas_call(
        kernel,
        out_shape=jax.ShapeDtypeStruct((n_cls, total), jnp.float32),
        grid=(1,),
        in_specs=[
            pl.BlockSpec((dim, total), lambda i: (0, 0)),     # batch-folded input
            pl.BlockSpec(packed.shape, lambda i: (0, 0)),     # packed weights/biases
        ],
        out_specs=pl.BlockSpec((n_cls, total), lambda i: (0, 0)),
        compiler_params=pltpu.CompilerParams(dimension_semantics=("arbitrary",)),
        cost_estimate=pl.CostEstimate(flops=flops, transcendentals=0,
                                      bytes_accessed=bytes_accessed),
    )(x2, packed)

    # (n_cls, B*T) -> (B, n_cls, T)
    return out2.reshape(n_cls, B, T).transpose(1, 0, 2)


def pick_compute_dtype():
    """bf16 weights / matmul operands on v6e / v7x; f32 on v5e and older."""
    kind = jax.devices()[0].device_kind.lower()
    if any(tag in kind for tag in ("v6", "v7", "7x")):
        return jnp.bfloat16
    return jnp.float32


# --------------------------- pure-JAX reference -------------------------------
def single_stage_model_ref(x, params):
    def conv1d(x, w, b, dilation=1, padding=0):
        out = lax.conv_general_dilated(
            x, w, window_strides=(1,), padding=[(padding, padding)],
            rhs_dilation=(dilation,), dimension_numbers=("NCH", "OIH", "NCH"))
        return out + b[None, :, None]

    out = conv1d(x, params["w_in"], params["b_in"])
    L = params["wd"].shape[0]
    for l in range(L):
        d = 2 ** l
        y = jax.nn.relu(conv1d(out, params["wd"][l], params["bd"][l],
                               dilation=d, padding=d))
        out = conv1d(y, params["w1"][l], params["b1"][l])  # dropout = identity (eval)
    return conv1d(out, params["w_out"], params["b_out"])


# ------------------------------ params init ----------------------------------
def init_params(key):
    ks = jax.random.split(key, 8)
    C = NUM_F_MAPS
    scale = 0.1
    return {
        # PyTorch Conv1d weight convention: (out_channels, in_channels, kernel)
        "w_in": scale * jax.random.normal(ks[0], (C, DIM, 1), jnp.float32),
        "b_in": scale * jax.random.normal(ks[1], (C,), jnp.float32),
        "wd": scale * jax.random.normal(ks[2], (NUM_LAYERS, C, C, 3), jnp.float32),
        "bd": scale * jax.random.normal(ks[3], (NUM_LAYERS, C), jnp.float32),
        "w1": scale * jax.random.normal(ks[4], (NUM_LAYERS, C, C, 1), jnp.float32),
        "b1": scale * jax.random.normal(ks[5], (NUM_LAYERS, C), jnp.float32),
        "w_out": scale * jax.random.normal(ks[6], (NUM_CLASSES, C, 1), jnp.float32),
        "b_out": scale * jax.random.normal(ks[7], (NUM_CLASSES,), jnp.float32),
    }


if __name__ == "__main__":
    key = jax.random.PRNGKey(0)
    k_x, k_p = jax.random.split(key)
    x = jax.random.normal(k_x, (BATCH, DIM, SEQ_LEN), jnp.float32)  # NCT, like PyTorch
    params = init_params(k_p)

    cdtype = pick_compute_dtype()
    packed, meta = pack_params(params, compute_dtype=cdtype)  # one-time re-layout

    fwd = jax.jit(functools.partial(single_stage_model_pallas,
                                    meta=meta, compute_dtype=cdtype))
    out = jax.block_until_ready(fwd(x, packed))

    ref = jax.block_until_ready(single_stage_model_ref(x, params))
    assert out.shape == (BATCH, NUM_CLASSES, SEQ_LEN), out.shape
    # Tolerance covers default-precision MXU bf16 operand truncation plus the
    # pack-time composition of the final 1x1 with conv_out (different rounding
    # order than two separate convs); real bugs produce O(0.1-1) errors.
    tol = 3e-2 if cdtype == jnp.bfloat16 else 1e-2
    err = float(jnp.max(jnp.abs(out - ref)))
    assert jnp.allclose(out, ref, atol=tol, rtol=tol), f"max abs diff {err}"

    print("KERNEL_OK")
</pallas_src>

<mosaic_0001>
module attributes {stable_mosaic.version = 11 : i64} {
  func.func @_single_stage_kernel(%arg0: i32, %arg1: memref<8x256xf32, #tpu.memory_space<vmem>>, %arg2: memref<32x1024xf32, #tpu.memory_space<vmem>>, %arg3: memref<4x256xf32, #tpu.memory_space<vmem>>) attributes {dimension_semantics = [#tpu.dimension_semantics<arbitrary>], iteration_bounds = array<i64: 1>, scalar_prefetch = 0 : i64, scratch_operands = 0 : i64, tpu.core_type = #tpu.core_type<tc>, window_params = [{pipeline_mode = #tpu.pipeline_mode<synchronous>, transform_indices = @transform_0, window_bounds = array<i64: 8, 256>}, {pipeline_mode = #tpu.pipeline_mode<synchronous>, transform_indices = @transform_1, window_bounds = array<i64: 32, 1024>}, {pipeline_mode = #tpu.pipeline_mode<synchronous>, transform_indices = @transform_2, window_bounds = array<i64: 4, 256>}]} {
    %c0 = arith.constant 0 : index
    %c0_0 = arith.constant 0 : index
    %0 = vector.load %arg2[%c0, %c0_0] : memref<32x1024xf32, #tpu.memory_space<vmem>>, vector<32x8xf32>
    %c0_1 = arith.constant 0 : index
    %c0_2 = arith.constant 0 : index
    %1 = vector.load %arg1[%c0_1, %c0_2] : memref<8x256xf32, #tpu.memory_space<vmem>>, vector<8x256xf32>
    %cst = arith.constant dense<0.000000e+00> : vector<32x256xf32>
    %2 = tpu.matmul %0, %1, %cst {dimension_numbers = #tpu.dot_dimension_numbers<[1], [0], [0], [1], [0, 0, 1, 1], [], []>} : vector<32x8xf32>, vector<8x256xf32>, vector<32x256xf32> -> vector<32x256xf32>
    %c0_3 = arith.constant 0 : index
    %c896 = arith.constant 896 : index
    %3 = vector.load %arg2[%c0_3, %c896] : memref<32x1024xf32, #tpu.memory_space<vmem>>, vector<32x1xf32>
    %4 = vector.broadcast %3 : vector<32x1xf32> to vector<32x256xf32>
    %5 = arith.addf %2, %4 : vector<32x256xf32>
    %6 = tpu.iota {dimensions = array<i32: 1>} : vector<32x256xi32>
    %c128_i32 = arith.constant 128 : i32
    %c0_i32 = arith.constant 0 : i32
    %7 = arith.cmpi eq, %c128_i32, %c0_i32 : i32
    %c1_i32 = arith.constant 1 : i32
    %8 = arith.select %7, %c1_i32, %c128_i32 : i32
    %9 = vector.broadcast %8 : i32 to vector<32x256xi32>
    %10 = arith.remsi %6, %9 : vector<32x256xi32>
    %c0_i32_4 = arith.constant 0 : i32
    %11 = vector.broadcast %c0_i32_4 : i32 to vector<32x256xi32>
    %12 = arith.cmpi ne, %10, %11 : vector<32x256xi32>
    %c0_i32_5 = arith.constant 0 : i32
    %13 = vector.broadcast %c0_i32_5 : i32 to vector<32x256xi32>
    %14 = arith.cmpi slt, %10, %13 : vector<32x256xi32>
    %c0_i32_6 = arith.constant 0 : i32
    %15 = arith.cmpi slt, %8, %c0_i32_6 : i32
    %16 = vector.broadcast %15 : i1 to vector<32x256xi1>
    %17 = vector.broadcast %16 : vector<32x256xi1> to vector<32x256xi1>
    %18 = arith.xori %14, %17 : vector<32x256xi1>
    %19 = arith.andi %18, %12 : vector<32x256xi1>
    %20 = vector.broadcast %8 : i32 to vector<32x256xi32>
    %21 = arith.addi %10, %20 : vector<32x256xi32>
    %22 = arith.select %19, %21, %10 : vector<32x256xi1>, vector<32x256xi32>
    %c1_i32_7 = arith.constant 1 : i32
    %23 = vector.broadcast %c1_i32_7 : i32 to vector<32x256xi32>
    %24 = arith.cmpi sge, %22, %23 : vector<32x256xi32>
    %c1_i32_8 = arith.constant 1 : i32
    %25 = tpu.dynamic_rotate %5 by %c1_i32_8 dim 1 : vector<32x256xf32>, i32 -> vector<32x256xf32>
    %cst_9 = arith.constant 0.000000e+00 : f32
    %26 = vector.broadcast %cst_9 : f32 to vector<32x256xf32>
    %27 = arith.select %24, %25, %26 : vector<32x256xi1>, vector<32x256xf32>
    %c127_i32 = arith.constant 127 : i32
    %28 = vector.broadcast %c127_i32 : i32 to vector<32x256xi32>
    %29 = arith.cmpi slt, %22, %28 : vector<32x256xi32>
    %c255_i32 = arith.constant 255 : i32
    %30 = tpu.dynamic_rotate %5 by %c255_i32 dim 1 : vector<32x256xf32>, i32 -> vector<32x256xf32>
    %cst_10 = arith.constant 0.000000e+00 : f32
    %31 = vector.broadcast %cst_10 : f32 to vector<32x256xf32>
    %32 = arith.select %29, %30, %31 : vector<32x256xi1>, vector<32x256xf32>
    %33 = tpu.concatenate %27, %5, %32 in 0 : vector<32x256xf32>, vector<32x256xf32>, vector<32x256xf32> -> vector<96x256xf32>
    %c0_11 = arith.constant 0 : index
    %c128 = arith.constant 128 : index
    %34 = vector.load %arg2[%c0_11, %c128] : memref<32x1024xf32, #tpu.memory_space<vmem>>, vector<32x96xf32>
    %c0_12 = arith.constant 0 : index
    %c897 = arith.constant 897 : index
    %35 = vector.load %arg2[%c0_12, %c897] : memref<32x1024xf32, #tpu.memory_space<vmem>>, vector<32x1xf32>
    %cst_13 = arith.constant dense<0.000000e+00> : vector<32x256xf32>
    %36 = tpu.matmul %34, %33, %cst_13 {dimension_numbers = #tpu.dot_dimension_numbers<[1], [0], [0], [1], [0, 0, 1, 1], [], []>} : vector<32x96xf32>, vector<96x256xf32>, vector<32x256xf32> -> vector<32x256xf32>
    %37 = vector.broadcast %35 : vector<32x1xf32> to vector<32x256xf32>
    %38 = arith.addf %36, %37 : vector<32x256xf32>
    %cst_14 = arith.constant 0.000000e+00 : f32
    %39 = vector.broadcast %cst_14 : f32 to vector<32x256xf32>
    %40 = arith.maximumf %38, %39 : vector<32x256xf32>
    %c0_15 = arith.constant 0 : index
    %c512 = arith.constant 512 : index
    %41 = vector.load %arg2[%c0_15, %c512] : memref<32x1024xf32, #tpu.memory_space<vmem>>, vector<32x32xf32>
    %c0_16 = arith.constant 0 : index
    %c900 = arith.constant 900 : index
    %42 = vector.load %arg2[%c0_16, %c900] : memref<32x1024xf32, #tpu.memory_space<vmem>>, vector<32x1xf32>
    %cst_17 = arith.constant dense<0.000000e+00> : vector<32x256xf32>
    %43 = tpu.matmul %41, %40, %cst_17 {dimension_numbers = #tpu.dot_dimension_numbers<[1], [0], [0], [1], [0, 0, 1, 1], [], []>} : vector<32x32xf32>, vector<32x256xf32>, vector<32x256xf32> -> vector<32x256xf32>
    %44 = vector.broadcast %42 : vector<32x1xf32> to vector<32x256xf32>
    %45 = arith.addf %43, %44 : vector<32x256xf32>
    %c2_i32 = arith.constant 2 : i32
    %46 = vector.broadcast %c2_i32 : i32 to vector<32x256xi32>
    %47 = arith.cmpi sge, %22, %46 : vector<32x256xi32>
    %c2_i32_18 = arith.constant 2 : i32
    %48 = tpu.dynamic_rotate %45 by %c2_i32_18 dim 1 : vector<32x256xf32>, i32 -> vector<32x256xf32>
    %cst_19 = arith.constant 0.000000e+00 : f32
    %49 = vector.broadcast %cst_19 : f32 to vector<32x256xf32>
    %50 = arith.select %47, %48, %49 : vector<32x256xi1>, vector<32x256xf32>
    %c126_i32 = arith.constant 126 : i32
    %51 = vector.broadcast %c126_i32 : i32 to vector<32x256xi32>
    %52 = arith.cmpi slt, %22, %51 : vector<32x256xi32>
    %c254_i32 = arith.constant 254 : i32
    %53 = tpu.dynamic_rotate %45 by %c254_i32 dim 1 : vector<32x256xf32>, i32 -> vector<32x256xf32>
    %cst_20 = arith.constant 0.000000e+00 : f32
    %54 = vector.broadcast %cst_20 : f32 to vector<32x256xf32>
    %55 = arith.select %52, %53, %54 : vector<32x256xi1>, vector<32x256xf32>
    %56 = tpu.concatenate %50, %45, %55 in 0 : vector<32x256xf32>, vector<32x256xf32>, vector<32x256xf32> -> vector<96x256xf32>
    %c0_21 = arith.constant 0 : index
    %c256 = arith.constant 256 : index
    %57 = vector.load %arg2[%c0_21, %c256] : memref<32x1024xf32, #tpu.memory_space<vmem>>, vector<32x96xf32>
    %c0_22 = arith.constant 0 : index
    %c898 = arith.constant 898 : index
    %58 = vector.load %arg2[%c0_22, %c898] : memref<32x1024xf32, #tpu.memory_space<vmem>>, vector<32x1xf32>
    %cst_23 = arith.constant dense<0.000000e+00> : vector<32x256xf32>
    %59 = tpu.matmul %57, %56, %cst_23 {dimension_numbers = #tpu.dot_dimension_numbers<[1], [0], [0], [1], [0, 0, 1, 1], [], []>} : vector<32x96xf32>, vector<96x256xf32>, vector<32x256xf32> -> vector<32x256xf32>
    %60 = vector.broadcast %58 : vector<32x1xf32> to vector<32x256xf32>
    %61 = arith.addf %59, %60 : vector<32x256xf32>
    %cst_24 = arith.constant 0.000000e+00 : f32
    %62 = vector.broadcast %cst_24 : f32 to vector<32x256xf32>
    %63 = arith.maximumf %61, %62 : vector<32x256xf32>
    %c0_25 = arith.constant 0 : index
    %c640 = arith.constant 640 : index
    %64 = vector.load %arg2[%c0_25, %c640] : memref<32x1024xf32, #tpu.memory_space<vmem>>, vector<32x32xf32>
    %c0_26 = arith.constant 0 : index
    %c901 = arith.constant 901 : index
    %65 = vector.load %arg2[%c0_26, %c901] : memref<32x1024xf32, #tpu.memory_space<vmem>>, vector<32x1xf32>
    %cst_27 = arith.constant dense<0.000000e+00> : vector<32x256xf32>
    %66 = tpu.matmul %64, %63, %cst_27 {dimension_numbers = #tpu.dot_dimension_numbers<[1], [0], [0], [1], [0, 0, 1, 1], [], []>} : vector<32x32xf32>, vector<32x256xf32>, vector<32x256xf32> -> vector<32x256xf32>
    %67 = vector.broadcast %65 : vector<32x1xf32> to vector<32x256xf32>
    %68 = arith.addf %66, %67 : vector<32x256xf32>
    %c4_i32 = arith.constant 4 : i32
    %69 = vector.broadcast %c4_i32 : i32 to vector<32x256xi32>
    %70 = arith.cmpi sge, %22, %69 : vector<32x256xi32>
    %c4_i32_28 = arith.constant 4 : i32
    %71 = tpu.dynamic_rotate %68 by %c4_i32_28 dim 1 : vector<32x256xf32>, i32 -> vector<32x256xf32>
    %cst_29 = arith.constant 0.000000e+00 : f32
    %72 = vector.broadcast %cst_29 : f32 to vector<32x256xf32>
    %73 = arith.select %70, %71, %72 : vector<32x256xi1>, vector<32x256xf32>
    %c124_i32 = arith.constant 124 : i32
    %74 = vector.broadcast %c124_i32 : i32 to vector<32x256xi32>
    %75 = arith.cmpi slt, %22, %74 : vector<32x256xi32>
    %c252_i32 = arith.constant 252 : i32
    %76 = tpu.dynamic_rotate %68 by %c252_i32 dim 1 : vector<32x256xf32>, i32 -> vector<32x256xf32>
    %cst_30 = arith.constant 0.000000e+00 : f32
    %77 = vector.broadcast %cst_30 : f32 to vector<32x256xf32>
    %78 = arith.select %75, %76, %77 : vector<32x256xi1>, vector<32x256xf32>
    %79 = tpu.concatenate %73, %68, %78 in 0 : vector<32x256xf32>, vector<32x256xf32>, vector<32x256xf32> -> vector<96x256xf32>
    %c0_31 = arith.constant 0 : index
    %c384 = arith.constant 384 : index
    %80 = vector.load %arg2[%c0_31, %c384] : memref<32x1024xf32, #tpu.memory_space<vmem>>, vector<32x96xf32>
    %c0_32 = arith.constant 0 : index
    %c899 = arith.constant 899 : index
    %81 = vector.load %arg2[%c0_32, %c899] : memref<32x1024xf32, #tpu.memory_space<vmem>>, vector<32x1xf32>
    %cst_33 = arith.constant dense<0.000000e+00> : vector<32x256xf32>
    %82 = tpu.matmul %80, %79, %cst_33 {dimension_numbers = #tpu.dot_dimension_numbers<[1], [0], [0], [1], [0, 0, 1, 1], [], []>} : vector<32x96xf32>, vector<96x256xf32>, vector<32x256xf32> -> vector<32x256xf32>
    %83 = vector.broadcast %81 : vector<32x1xf32> to vector<32x256xf32>
    %84 = arith.addf %82, %83 : vector<32x256xf32>
    %cst_34 = arith.constant 0.000000e+00 : f32
    %85 = vector.broadcast %cst_34 : f32 to vector<32x256xf32>
    %86 = arith.maximumf %84, %85 : vector<32x256xf32>
    %c0_35 = arith.constant 0 : index
    %c768 = arith.constant 768 : index
    %87 = vector.load %arg2[%c0_35, %c768] : memref<32x1024xf32, #tpu.memory_space<vmem>>, vector<4x32xf32>
    %c0_36 = arith.constant 0 : index
    %c902 = arith.constant 902 : index
    %88 = vector.load %arg2[%c0_36, %c902] : memref<32x1024xf32, #tpu.memory_space<vmem>>, vector<4x1xf32>
    %cst_37 = arith.constant dense<0.000000e+00> : vector<4x256xf32>
    %89 = tpu.matmul %87, %86, %cst_37 {dimension_numbers = #tpu.dot_dimension_numbers<[1], [0], [0], [1], [0, 0, 1, 1], [], []>} : vector<4x32xf32>, vector<32x256xf32>, vector<4x256xf32> -> vector<4x256xf32>
    %90 = vector.broadcast %88 : vector<4x1xf32> to vector<4x256xf32>
    %91 = arith.addf %89, %90 : vector<4x256xf32>
    %c0_38 = arith.constant 0 : index
    %c0_39 = arith.constant 0 : index
    %92 = vector.load %arg3[%c0_38, %c0_39] : memref<4x256xf32, #tpu.memory_space<vmem>>, vector<4x256xf32>
    tpu.vector_store %arg3[%c0_38, %c0_39], %91 {strides = array<i32>} : memref<4x256xf32, #tpu.memory_space<vmem>>, vector<4x256xf32>,
    return
  }
  func.func @transform_0(%arg0: i32) -> (i32, i32) {
    %c0_i32 = arith.constant 0 : i32
    %c0_i32_0 = arith.constant 0 : i32
    %c0_i32_1 = arith.constant 0 : i32
    return %c0_i32, %c0_i32_0 : i32, i32
  }
  func.func @transform_1(%arg0: i32) -> (i32, i32) {
    %c0_i32 = arith.constant 0 : i32
    %c0_i32_0 = arith.constant 0 : i32
    %c0_i32_1 = arith.constant 0 : i32
    return %c0_i32, %c0_i32_0 : i32, i32
  }
  func.func @transform_2(%arg0: i32) -> (i32, i32) {
    %c0_i32 = arith.constant 0 : i32
    %c0_i32_0 = arith.constant 0 : i32
    %c0_i32_1 = arith.constant 0 : i32
    return %c0_i32, %c0_i32_0 : i32, i32
  }
}

</mosaic_0001>

<llo_original>
// kernel: single_stage_model_pallas.1
$region0: #{single_stage_model_pallas.1}
  #allocation0 [shape = 'u32[]', space=smem, size = 0x4, offset = 0x4, fixed_abs, tag = 'smem constant byte address 0x4 - core index']
  #allocation1 [shape = 'u32[144,128]{1,0:T(1,128)}', space=vmem, size = 0x12000, scoped, tag = 'internal scratch']
  %s0 = inlined_call_operand.hbm [shape: f32[8,256], index: 0, kind: input, shape index: {}]
  %s1 = inlined_call_operand.hbm [shape: f32[32,1024], index: 1, kind: input, shape index: {}]
  %s2 = inlined_call_operand.hbm [shape: f32[4,256], index: 2, kind: output, shape index: {}]
  %s3 = sld [smem:[#allocation0]]
  $region26: #{single_stage_model_pallas.1} parent=0
    _
  %s5 = ssub.s32 1, %s3
  %s6 = scalar_select 0, %s5, %s3
  $region1: #{single_stage_model_pallas.1} parent=0
    #allocation2 [shape = 'u8[8192]{0}', space=vmem, size = 0x2000, scoped, tag = 'input window, operand 0, single buffered']
    #allocation3 [shape = 's32[1]{0}', space=sflag, size = 0x4, scoped, tag = 'scoped memory for single_stage_model_pallas.1']
    #allocation4 [shape = 's32[1]{0}', space=sflag, size = 0x4, scoped, tag = 'scoped memory for single_stage_model_pallas.1']
    #allocation5 [shape = 'u8[131072]{0}', space=vmem, size = 0x20000, scoped, tag = 'input window, operand 1, single buffered']
    #allocation6 [shape = 's32[1]{0}', space=sflag, size = 0x4, scoped, tag = 'scoped memory for single_stage_model_pallas.1']
    #allocation7 [shape = 'u8[4096]{0}', space=vmem, size = 0x1000, scoped, tag = 'output window, operand 0, single buffered']
    %7 = vsyncpa [#allocation3], 0
    %8 = vsyncpa [#allocation6], 0
    %9 = vsyncpa [#allocation4], 0
    // Predicated region
    $region2: #{single_stage_model_pallas.1} parent=1 // pred_check
      _
    $region3: #{single_stage_model_pallas.1} parent=1 // pred_check_branch
      %11 = sbr.rel (0) target = $region5
    $region4: #{single_stage_model_pallas.1} parent=1 // pred_region
      %s13 = ssub.s32 256, 256
      %14 = vsyncadd [#allocation3], %s13
      %s16 = sshll.u32 [#allocation2], 4
      %s17 = int_to_ptr.vmem [resolvable:$true] %s16
      %19 = dma.hbm_to_vmem [thread:$0]  %s0, 256, %s17, [#allocation3]
    $region5: #{single_stage_model_pallas.1} parent=1 // pred_fallthru
      _
    // Predicated region
    $region6: #{single_stage_model_pallas.1} parent=1 // pred_check
      _
    $region7: #{single_stage_model_pallas.1} parent=1 // pred_check_branch
      %21 = sbr.rel (0) target = $region9
    $region8: #{single_stage_model_pallas.1} parent=1 // pred_region
      %s23 = ssub.s32 4096, 4096
      %24 = vsyncadd [#allocation6], %s23
      %s25 = sshll.u32 [#allocation5], 4
      %s26 = int_to_ptr.vmem [resolvable:$true] %s25
      %31 = dma.hbm_to_vmem [thread:$0]  %s1, 4096, %s26, [#allocation6], 1024, 1024, 64
    $region9: #{single_stage_model_pallas.1} parent=1 // pred_fallthru
      _
    // Predicated region
    $region10: #{single_stage_model_pallas.1} parent=1 // pred_check
      _
    $region11: #{single_stage_model_pallas.1} parent=1 // pred_check_branch
      %33 = sbr.rel (0) target = $region13
    $region12: #{single_stage_model_pallas.1} parent=1 // pred_region
      %34 = dma.done [#allocation3], 256
    $region13: #{single_stage_model_pallas.1} parent=1 // pred_fallthru
      _
    // Predicated region
    $region14: #{single_stage_model_pallas.1} parent=1 // pred_check
      _
    $region15: #{single_stage_model_pallas.1} parent=1 // pred_check_branch
      %36 = sbr.rel (0) target = $region17
    $region16: #{single_stage_model_pallas.1} parent=1 // pred_region
      %37 = dma.done [#allocation6], 4096
    $region17: #{single_stage_model_pallas.1} parent=1 // pred_fallthru
      _
    %v38 = vld [vmem:[#allocation5] sm:$0xff]
    %v39 = vld [vmem:[#allocation5 + $0x40] sm:$0xff]
    %v40 = vld [vmem:[#allocation5 + $0x80] sm:$0xff]
    %v41 = vld [vmem:[#allocation5 + $0xc0] sm:$0xff]
    %v42 = vld [vmem:[#allocation2] sm:$0xff]
    %v43 = vld [vmem:[#allocation2 + $0x8] sm:$0xff]
    %v44 = vld [vmem:[#allocation5 + $0x38] sm:$0xff]
    %v45 = vld [vmem:[#allocation5 + $0x78] sm:$0xff]
    %v46 = vld [vmem:[#allocation5 + $0xb8] sm:$0xff]
    %v47 = vld [vmem:[#allocation5 + $0xf8] sm:$0xff]
    %49 = vset.pattern.permute.xlu0 0
    %50 = vperm.xlu0 %49, %v44
    %v51 = vpop.permute.xlu0 %50
    %54 = vset.pattern.permute.xlu0 0
    %55 = vperm.xlu0 %54, %v45
    %v56 = vpop.permute.xlu0 %55
    %59 = vset.pattern.permute.xlu0 0
    %60 = vperm.xlu0 %59, %v46
    %v61 = vpop.permute.xlu0 %60
    %64 = vset.pattern.permute.xlu0 0
    %65 = vperm.xlu0 %64, %v47
    %v66 = vpop.permute.xlu0 %65
    %vm68 = vcmask 64512
    %v70 = vsel %vm68, %v38, 0
    %v73 = vsel %vm68, %v39, 0
    %v76 = vsel %vm68, %v40, 0
    %v79 = vsel %vm68, %v41, 0
    %81 = vmatprep.subr.mxu0 %v43
    %82 = vmatpush1.msra.mxu0 %v42
    %83 = vmatprep.subr.mxu0 0.0
    %84 = vmatpush1.msra.mxu0 0.0
    %85 = vmatprep.subr.mxu0 0.0
    %86 = vmatpush1.msra.mxu0 0.0
    %87 = vmatprep.subr.mxu0 0.0
    %88 = vmatpush1.msra.mxu0 0.0
    %89 = vmatprep.subr.mxu0 0.0
    %90 = vmatpush1.msra.mxu0 0.0
    %91 = vmatprep.subr.mxu0 0.0
    %92 = vmatpush1.msra.mxu0 0.0
    %93 = vmatprep.subr.mxu0 0.0
    %94 = vmatpush1.msra.mxu0 0.0
    %95 = vmatprep.subr.mxu0 0.0
    %96 = vmatpush1.msra.mxu0 0.0
    %97 = vmatprep.subr.mxu0 0.0
    %98 = vmatpush1.msra.mxu0 0.0
    %99 = vmatprep.subr.mxu0 0.0
    %100 = vmatpush1.msra.mxu0 0.0
    %101 = vmatprep.subr.mxu0 0.0
    %102 = vmatpush1.msra.mxu0 0.0
    %103 = vmatprep.subr.mxu0 0.0
    %104 = vmatpush1.msra.mxu0 0.0
    %105 = vmatprep.subr.mxu0 0.0
    %106 = vmatpush1.msra.mxu0 0.0
    %107 = vmatprep.subr.mxu0 0.0
    %108 = vmatpush1.msra.mxu0 0.0
    %109 = vmatprep.subr.mxu0 0.0
    %110 = vmatpush1.msra.mxu0 0.0
    %111 = vmatprep.subr.mxu0 0.0
    %112 = vmatpush1.msra.mxu0 0.0
    %113 = vmatprep.subr.mxu0 0.0
    %114 = vmatpush1.msra.mxu0 0.0
    %115 = vmatprep.subr.mxu0 0.0
    %116 = vmatpush1.msra.mxu0 0.0
    %117 = vmatprep.subr.mxu0 0.0
    %118 = vmatpush1.msra.mxu0 0.0
    %119 = vmatprep.subr.mxu0 0.0
    %120 = vmatpush1.msra.mxu0 0.0
    %121 = vmatprep.subr.mxu0 0.0
    %122 = vmatpush1.msra.mxu0 0.0
    %123 = vmatprep.subr.mxu0 0.0
    %124 = vmatpush1.msra.mxu0 0.0
    %125 = vmatprep.subr.mxu0 0.0
    %126 = vmatpush1.msra.mxu0 0.0
    %127 = vmatprep.subr.mxu0 0.0
    %128 = vmatpush1.msra.mxu0 0.0
    %129 = vmatprep.subr.mxu0 0.0
    %130 = vmatpush1.msra.mxu0 0.0
    %131 = vmatprep.subr.mxu0 0.0
    %132 = vmatpush1.msra.mxu0 0.0
    %133 = vmatprep.subr.mxu0 0.0
    %134 = vmatpush1.msra.mxu0 0.0
    %135 = vmatprep.subr.mxu0 0.0
    %136 = vmatpush1.msra.mxu0 0.0
    %137 = vmatprep.subr.mxu0 0.0
    %138 = vmatpush1.msra.mxu0 0.0
    %139 = vmatprep.subr.mxu0 0.0
    %140 = vmatpush1.msra.mxu0 0.0
    %141 = vmatprep.subr.mxu0 0.0
    %142 = vmatpush1.msra.mxu0 0.0
    %143 = vmatprep.subr.mxu0 0.0
    %144 = vmatpush1.msra.mxu0 0.0
    %145 = vmatprep.mubr.f32.mxu0 0.0
    %146 = vmatmul.mubr.f32.gmra.mrb[0].mxu0 %v70
    %v147 = vpop.f32.mrb[0].mxu0
    %v148 = vadd.f32 %v51, %v147
    %v149 = vpop.f32.mrb[0].mxu0
    %v150 = vadd.f32 %v51, %v149
    %151 = vmatprep.mubr.f32.mxu0 0.0
    %152 = vmatmul.mubr.f32.gmra.mrb[0].mxu0 %v73
    %v153 = vpop.f32.mrb[0].mxu0
    %v154 = vadd.f32 %v56, %v153
    %v155 = vpop.f32.mrb[0].mxu0
    %v156 = vadd.f32 %v56, %v155
    %157 = vmatprep.mubr.f32.mxu0 0.0
    %158 = vmatmul.mubr.f32.gmra.mrb[0].mxu0 %v76
    %v159 = vpop.f32.mrb[0].mxu0
    %v160 = vadd.f32 %v61, %v159
    %v161 = vpop.f32.mrb[0].mxu0
    %v162 = vadd.f32 %v61, %v161
    %163 = vmatprep.mubr.f32.mxu0 0.0
    %164 = vmatmul.mubr.f32.gmra.mrb[0].mxu0 %v79
    %v165 = vpop.f32.mrb[0].mxu0
    %v166 = vadd.f32 %v66, %v165
    %v167 = vpop.f32.mrb[0].mxu0
    %v168 = vadd.f32 %v66, %v167
    %169 = vdwg.mxu0
    %v170 = vlaneseq
    %v171 = vand.u32 %v170, 127
    %v172 = vadd.s32 %v171, 128
    %vm173 = vcmp.lt.s32.totalorder %v171, 0
    %v174 = vsub.s32 0, %v171
    %v175 = vsel %vm173, %v174, %v171
    %v176 = vshrl.u32 %v175, 7
    %v177 = vand.u32 %v175, 127
    %v178 = vsub.s32 0, %v177
    %v179 = vsel %vm173, %v178, %v177
    %vm180 = vcmp.lt.s32.totalorder %v172, 0
    %v181 = vsub.s32 0, %v172
    %v182 = vsel %vm180, %v181, %v172
    %v183 = vshrl.u32 %v182, 7
    %v184 = vand.u32 %v182, 127
    %v185 = vsub.s32 0, %v184
    %v186 = vsel %vm180, %v185, %v184
    %vm187 = vcmp.ne.s32.totalorder %v179, 0
    %vm188 = vcmp.ne.s32.totalorder %v186, 0
    %vm189 = vcmp.lt.s32.totalorder %v179, 0
    %vm190 = vcmp.lt.s32.totalorder %v186, 0
    %vm191 = vmand %vm189, %vm187
    %vm192 = vmand %vm190, %vm188
    %v193 = vadd.s32 %v179, 128
    %v194 = vadd.s32 %v186, 128
    %v195 = vsel %vm191, %v193, %v179
    %v196 = vsel %vm192, %v194, %v186
    %vm197 = vcmp.ge.s32.totalorder %v195, 1
    %vm198 = vcmp.ge.s32.totalorder %v196, 1
    %199 = vrot.lane.b32.xlu0 %v148, 1
    %v200 = vpop.permute.xlu0 %199
    %201 = vrot.lane.b32.xlu0 %v154, 1
    %v202 = vpop.permute.xlu0 %201
    %203 = vrot.lane.b32.xlu0 %v160, 1
    %v204 = vpop.permute.xlu0 %203
    %205 = vrot.lane.b32.xlu0 %v166, 1
    %v206 = vpop.permute.xlu0 %205
    %207 = vrot.lane.b32.xlu0 %v150, 1
    %v208 = vpop.permute.xlu0 %207
    %209 = vrot.lane.b32.xlu0 %v156, 1
    %v210 = vpop.permute.xlu0 %209
    %211 = vrot.lane.b32.xlu0 %v162, 1
    %v212 = vpop.permute.xlu0 %211
    %213 = vrot.lane.b32.xlu0 %v168, 1
    %v214 = vpop.permute.xlu0 %213
    %vm215 = vcmp.lt.s32.totalorder %v171, 1
    %v216 = vsel %vm215, %v200, %v208
    %v217 = vsel %vm215, %v202, %v210
    %v218 = vsel %vm215, %v204, %v212
    %v219 = vsel %vm215, %v206, %v214
    %v220 = vsel %vm215, %v208, %v200
    %v221 = vsel %vm215, %v210, %v202
    %v222 = vsel %vm215, %v212, %v204
    %v223 = vsel %vm215, %v214, %v206
    %v224 = vsel %vm197, %v220, 0.0
    %v225 = vsel %vm198, %v216, 0.0
    %v226 = vsel %vm197, %v221, 0.0
    %v227 = vsel %vm198, %v217, 0.0
    %v228 = vsel %vm197, %v222, 0.0
    %v229 = vsel %vm198, %v218, 0.0
    %v230 = vsel %vm197, %v223, 0.0
    %v231 = vsel %vm198, %v219, 0.0
    %vm232 = vcmp.lt.s32.totalorder %v195, 127
    %vm233 = vcmp.lt.s32.totalorder %v196, 127
    %234 = vrot.lane.b32.xlu0 %v148, 127
    %v235 = vpop.permute.xlu0 %234
    %236 = vrot.lane.b32.xlu0 %v154, 127
    %v237 = vpop.permute.xlu0 %236
    %238 = vrot.lane.b32.xlu0 %v160, 127
    %v239 = vpop.permute.xlu0 %238
    %240 = vrot.lane.b32.xlu0 %v166, 127
    %v241 = vpop.permute.xlu0 %240
    %242 = vrot.lane.b32.xlu0 %v150, 127
    %v243 = vpop.permute.xlu0 %242
    %244 = vrot.lane.b32.xlu0 %v156, 127
    %v245 = vpop.permute.xlu0 %244
    %246 = vrot.lane.b32.xlu0 %v162, 127
    %v247 = vpop.permute.xlu0 %246
    %248 = vrot.lane.b32.xlu0 %v168, 127
    %v249 = vpop.permute.xlu0 %248
    %vm250 = vcmp.lt.s32.totalorder %v171, 127
    %v251 = vsel %vm250, %v235, %v243
    %v252 = vsel %vm250, %v237, %v245
    %v253 = vsel %vm250, %v239, %v247
    %v254 = vsel %vm250, %v241, %v249
    %v255 = vsel %vm250, %v243, %v235
    %v256 = vsel %vm250, %v245, %v237
    %v257 = vsel %vm250, %v247, %v239
    %v258 = vsel %vm250, %v249, %v241
    %v259 = vsel %vm232, %v251, 0.0
    %v260 = vsel %vm233, %v255, 0.0
    %v261 = vsel %vm232, %v252, 0.0
    %v262 = vsel %vm233, %v256, 0.0
    %v263 = vsel %vm232, %v253, 0.0
    %v264 = vsel %vm233, %v257, 0.0
    %v265 = vsel %vm232, %v254, 0.0
    %v266 = vsel %vm233, %v258, 0.0
    %v267 = vld [vmem:[#allocation5 + $0x8] sm:$0xff]
    %v268 = vld [vmem:[#allocation5 + $0x48] sm:$0xff]
    %v269 = vld [vmem:[#allocation5 + $0x88] sm:$0xff]
    %v270 = vld [vmem:[#allocation5 + $0xc8] sm:$0xff]
    %271 = vset.pattern.permute.xlu0 1
    %272 = vperm.xlu0 %271, %v44
    %v273 = vpop.permute.xlu0 %272
    %275 = vset.pattern.permute.xlu0 1
    %276 = vperm.xlu0 %275, %v45
    %v277 = vpop.permute.xlu0 %276
    %279 = vset.pattern.permute.xlu0 1
    %280 = vperm.xlu0 %279, %v46
    %v281 = vpop.permute.xlu0 %280
    %283 = vset.pattern.permute.xlu0 1
    %284 = vperm.xlu0 %283, %v47
    %v285 = vpop.permute.xlu0 %284
    %vm287 = vcmask 785408
    %v289 = vsel %vm287, %v267, 0
    %v292 = vsel %vm287, %v268, 0
    %v295 = vsel %vm287, %v269, 0
    %v298 = vsel %vm287, %v270, 0
    %300 = vmatprep.subr.mxu0 %v225
    %301 = vmatpush1.msra.mxu0 %v224
    %302 = vmatprep.subr.mxu0 %v227
    %303 = vmatpush1.msra.mxu0 %v226
    %304 = vmatprep.subr.mxu0 %v229
    %305 = vmatpush1.msra.mxu0 %v228
    %306 = vmatprep.subr.mxu0 %v231
    %307 = vmatpush1.msra.mxu0 %v230
    %308 = vmatprep.subr.mxu0 %v150
    %309 = vmatpush1.msra.mxu0 %v148
    %310 = vmatprep.subr.mxu0 %v156
    %311 = vmatpush1.msra.mxu0 %v154
    %312 = vmatprep.subr.mxu0 %v162
    %313 = vmatpush1.msra.mxu0 %v160
    %314 = vmatprep.subr.mxu0 %v168
    %315 = vmatpush1.msra.mxu0 %v166
    %316 = vmatprep.subr.mxu0 %v260
    %317 = vmatpush1.msra.mxu0 %v259
    %318 = vmatprep.subr.mxu0 %v262
    %319 = vmatpush1.msra.mxu0 %v261
    %320 = vmatprep.subr.mxu0 %v264
    %321 = vmatpush1.msra.mxu0 %v263
    %322 = vmatprep.subr.mxu0 %v266
    %323 = vmatpush1.msra.mxu0 %v265
    %324 = vmatprep.subr.mxu0 0.0
    %325 = vmatpush1.msra.mxu0 0.0
    %326 = vmatprep.subr.mxu0 0.0
    %327 = vmatpush1.msra.mxu0 0.0
    %328 = vmatprep.subr.mxu0 0.0
    %329 = vmatpush1.msra.mxu0 0.0
    %330 = vmatprep.subr.mxu0 0.0
    %331 = vmatpush1.msra.mxu0 0.0
    %332 = vmatprep.subr.mxu0 0.0
    %333 = vmatpush1.msra.mxu0 0.0
    %334 = vmatprep.subr.mxu0 0.0
    %335 = vmatpush1.msra.mxu0 0.0
    %336 = vmatprep.subr.mxu0 0.0
    %337 = vmatpush1.msra.mxu0 0.0
    %338 = vmatprep.subr.mxu0 0.0
    %339 = vmatpush1.msra.mxu0 0.0
    %340 = vmatprep.subr.mxu0 0.0
    %341 = vmatpush1.msra.mxu0 0.0
    %342 = vmatprep.subr.mxu0 0.0
    %343 = vmatpush1.msra.mxu0 0.0
    %344 = vmatprep.subr.mxu0 0.0
    %345 = vmatpush1.msra.mxu0 0.0
    %346 = vmatprep.subr.mxu0 0.0
    %347 = vmatpush1.msra.mxu0 0.0
    %348 = vmatprep.subr.mxu0 0.0
    %349 = vmatpush1.msra.mxu0 0.0
    %350 = vmatprep.subr.mxu0 0.0
    %351 = vmatpush1.msra.mxu0 0.0
    %352 = vmatprep.subr.mxu0 0.0
    %353 = vmatpush1.msra.mxu0 0.0
    %354 = vmatprep.subr.mxu0 0.0
    %355 = vmatpush1.msra.mxu0 0.0
    %356 = vmatprep.subr.mxu0 0.0
    %357 = vmatpush1.msra.mxu0 0.0
    %358 = vmatprep.subr.mxu0 0.0
    %359 = vmatpush1.msra.mxu0 0.0
    %360 = vmatprep.subr.mxu0 0.0
    %361 = vmatpush1.msra.mxu0 0.0
    %362 = vmatprep.subr.mxu0 0.0
    %363 = vmatpush1.msra.mxu0 0.0
    %364 = vmatprep.mubr.f32.mxu0 0.0
    %365 = vmatmul.mubr.f32.gmra.mrb[0].mxu0 %v289
    %v366 = vpop.f32.mrb[0].mxu0
    %v367 = vadd.f32 %v273, %v366
    %v368 = vpop.f32.mrb[0].mxu0
    %v369 = vadd.f32 %v273, %v368
    %370 = vmatprep.mubr.f32.mxu0 0.0
    %371 = vmatmul.mubr.f32.gmra.mrb[0].mxu0 %v292
    %v372 = vpop.f32.mrb[0].mxu0
    %v373 = vadd.f32 %v277, %v372
    %v374 = vpop.f32.mrb[0].mxu0
    %v375 = vadd.f32 %v277, %v374
    %376 = vmatprep.mubr.f32.mxu0 0.0
    %377 = vmatmul.mubr.f32.gmra.mrb[0].mxu0 %v295
    %v378 = vpop.f32.mrb[0].mxu0
    %v379 = vadd.f32 %v281, %v378
    %v380 = vpop.f32.mrb[0].mxu0
    %v381 = vadd.f32 %v281, %v380
    %382 = vmatprep.mubr.f32.mxu0 0.0
    %383 = vmatmul.mubr.f32.gmra.mrb[0].mxu0 %v298
    %v384 = vpop.f32.mrb[0].mxu0
    %v385 = vadd.f32 %v285, %v384
    %v386 = vpop.f32.mrb[0].mxu0
    %v387 = vadd.f32 %v285, %v386
    %388 = vdwg.mxu0
    %v389 = vmax.f32 %v367, 0.0
    %v390 = vmax.f32 %v369, 0.0
    %v391 = vmax.f32 %v373, 0.0
    %v392 = vmax.f32 %v375, 0.0
    %v393 = vmax.f32 %v379, 0.0
    %v394 = vmax.f32 %v381, 0.0
    %v395 = vmax.f32 %v385, 0.0
    %v396 = vmax.f32 %v387, 0.0
    %v397 = vld [vmem:[#allocation5 + $0x20] sm:$0xff]
    %v398 = vld [vmem:[#allocation5 + $0x60] sm:$0xff]
    %v399 = vld [vmem:[#allocation5 + $0xa0] sm:$0xff]
    %v400 = vld [vmem:[#allocation5 + $0xe0] sm:$0xff]
    %401 = vset.pattern.permute.xlu0 4
    %402 = vperm.xlu0 %401, %v44
    %v403 = vpop.permute.xlu0 %402
    %405 = vset.pattern.permute.xlu0 4
    %406 = vperm.xlu0 %405, %v45
    %v407 = vpop.permute.xlu0 %406
    %409 = vset.pattern.permute.xlu0 4
    %410 = vperm.xlu0 %409, %v46
    %v411 = vpop.permute.xlu0 %410
    %413 = vset.pattern.permute.xlu0 4
    %414 = vperm.xlu0 %413, %v47
    %v415 = vpop.permute.xlu0 %414
    %vm417 = vcmask 261120
    %v419 = vsel %vm417, %v397, 0
    %v422 = vsel %vm417, %v398, 0
    %v425 = vsel %vm417, %v399, 0
    %v428 = vsel %vm417, %v400, 0
    %430 = vmatprep.subr.mxu0 %v390
    %431 = vmatpush1.msra.mxu0 %v389
    %432 = vmatprep.subr.mxu0 %v392
    %433 = vmatpush1.msra.mxu0 %v391
    %434 = vmatprep.subr.mxu0 %v394
    %435 = vmatpush1.msra.mxu0 %v393
    %436 = vmatprep.subr.mxu0 %v396
    %437 = vmatpush1.msra.mxu0 %v395
    %438 = vmatprep.subr.mxu0 0.0
    %439 = vmatpush1.msra.mxu0 0.0
    %440 = vmatprep.subr.mxu0 0.0
    %441 = vmatpush1.msra.mxu0 0.0
    %442 = vmatprep.subr.mxu0 0.0
    %443 = vmatpush1.msra.mxu0 0.0
    %444 = vmatprep.subr.mxu0 0.0
    %445 = vmatpush1.msra.mxu0 0.0
    %446 = vmatprep.subr.mxu0 0.0
    %447 = vmatpush1.msra.mxu0 0.0
    %448 = vmatprep.subr.mxu0 0.0
    %449 = vmatpush1.msra.mxu0 0.0
    %450 = vmatprep.subr.mxu0 0.0
    %451 = vmatpush1.msra.mxu0 0.0
    %452 = vmatprep.subr.mxu0 0.0
    %453 = vmatpush1.msra.mxu0 0.0
    %454 = vmatprep.subr.mxu0 0.0
    %455 = vmatpush1.msra.mxu0 0.0
    %456 = vmatprep.subr.mxu0 0.0
    %457 = vmatpush1.msra.mxu0 0.0
    %458 = vmatprep.subr.mxu0 0.0
    %459 = vmatpush1.msra.mxu0 0.0
    %460 = vmatprep.subr.mxu0 0.0
    %461 = vmatpush1.msra.mxu0 0.0
    %462 = vmatprep.subr.mxu0 0.0
    %463 = vmatpush1.msra.mxu0 0.0
    %464 = vmatprep.subr.mxu0 0.0
    %465 = vmatpush1.msra.mxu0 0.0
    %466 = vmatprep.subr.mxu0 0.0
    %467 = vmatpush1.msra.mxu0 0.0
    %468 = vmatprep.subr.mxu0 0.0
    %469 = vmatpush1.msra.mxu0 0.0
    %470 = vmatprep.subr.mxu0 0.0
    %471 = vmatpush1.msra.mxu0 0.0
    %472 = vmatprep.subr.mxu0 0.0
    %473 = vmatpush1.msra.mxu0 0.0
    %474 = vmatprep.subr.mxu0 0.0
    %475 = vmatpush1.msra.mxu0 0.0
    %476 = vmatprep.subr.mxu0 0.0
    %477 = vmatpush1.msra.mxu0 0.0
    %478 = vmatprep.subr.mxu0 0.0
    %479 = vmatpush1.msra.mxu0 0.0
    %480 = vmatprep.subr.mxu0 0.0
    %481 = vmatpush1.msra.mxu0 0.0
    %482 = vmatprep.subr.mxu0 0.0
    %483 = vmatpush1.msra.mxu0 0.0
    %484 = vmatprep.subr.mxu0 0.0
    %485 = vmatpush1.msra.mxu0 0.0
    %486 = vmatprep.subr.mxu0 0.0
    %487 = vmatpush1.msra.mxu0 0.0
    %488 = vmatprep.subr.mxu0 0.0
    %489 = vmatpush1.msra.mxu0 0.0
    %490 = vmatprep.subr.mxu0 0.0
    %491 = vmatpush1.msra.mxu0 0.0
    %492 = vmatprep.subr.mxu0 0.0
    %493 = vmatpush1.msra.mxu0 0.0
    %494 = vmatprep.mubr.f32.mxu0 0.0
    %495 = vmatmul.mubr.f32.gmra.mrb[0].mxu0 %v419
    %v496 = vpop.f32.mrb[0].mxu0
    %v497 = vadd.f32 %v403, %v496
    %v498 = vpop.f32.mrb[0].mxu0
    %v499 = vadd.f32 %v403, %v498
    %500 = vmatprep.mubr.f32.mxu0 0.0
    %501 = vmatmul.mubr.f32.gmra.mrb[0].mxu0 %v422
    %v502 = vpop.f32.mrb[0].mxu0
    %v503 = vadd.f32 %v407, %v502
    %v504 = vpop.f32.mrb[0].mxu0
    %v505 = vadd.f32 %v407, %v504
    %506 = vmatprep.mubr.f32.mxu0 0.0
    %507 = vmatmul.mubr.f32.gmra.mrb[0].mxu0 %v425
    %v508 = vpop.f32.mrb[0].mxu0
    %v509 = vadd.f32 %v411, %v508
    %v510 = vpop.f32.mrb[0].mxu0
    %v511 = vadd.f32 %v411, %v510
    %512 = vmatprep.mubr.f32.mxu0 0.0
    %513 = vmatmul.mubr.f32.gmra.mrb[0].mxu0 %v428
    %v514 = vpop.f32.mrb[0].mxu0
    %v515 = vadd.f32 %v415, %v514
    %v516 = vpop.f32.mrb[0].mxu0
    %v517 = vadd.f32 %v415, %v516
    %518 = vdwg.mxu0
    %vm519 = vcmp.ge.s32.totalorder %v195, 2
    %vm520 = vcmp.ge.s32.totalorder %v196, 2
    %521 = vrot.lane.b32.xlu0 %v497, 2
    %v522 = vpop.permute.xlu0 %521
    %523 = vrot.lane.b32.xlu0 %v503, 2
    %v524 = vpop.permute.xlu0 %523
    %525 = vrot.lane.b32.xlu0 %v509, 2
    %v526 = vpop.permute.xlu0 %525
    %527 = vrot.lane.b32.xlu0 %v515, 2
    %v528 = vpop.permute.xlu0 %527
    %529 = vrot.lane.b32.xlu0 %v499, 2
    %v530 = vpop.permute.xlu0 %529
    %531 = vrot.lane.b32.xlu0 %v505, 2
    %v532 = vpop.permute.xlu0 %531
    %533 = vrot.lane.b32.xlu0 %v511, 2
    %v534 = vpop.permute.xlu0 %533
    %535 = vrot.lane.b32.xlu0 %v517, 2
    %v536 = vpop.permute.xlu0 %535
    %vm537 = vcmp.lt.s32.totalorder %v171, 2
    %v538 = vsel %vm537, %v522, %v530
    %v539 = vsel %vm537, %v524, %v532
    %v540 = vsel %vm537, %v526, %v534
    %v541 = vsel %vm537, %v528, %v536
    %v542 = vsel %vm537, %v530, %v522
    %v543 = vsel %vm537, %v532, %v524
    %v544 = vsel %vm537, %v534, %v526
    %v545 = vsel %vm537, %v536, %v528
    %v546 = vsel %vm519, %v542, 0.0
    %v547 = vsel %vm520, %v538, 0.0
    %v548 = vsel %vm519, %v543, 0.0
    %v549 = vsel %vm520, %v539, 0.0
    %v550 = vsel %vm519, %v544, 0.0
    %v551 = vsel %vm520, %v540, 0.0
    %v552 = vsel %vm519, %v545, 0.0
    %v553 = vsel %vm520, %v541, 0.0
    %vm554 = vcmp.lt.s32.totalorder %v195, 126
    %vm555 = vcmp.lt.s32.totalorder %v196, 126
    %556 = vrot.lane.b32.xlu0 %v497, 126
    %v557 = vpop.permute.xlu0 %556
    %558 = vrot.lane.b32.xlu0 %v503, 126
    %v559 = vpop.permute.xlu0 %558
    %560 = vrot.lane.b32.xlu0 %v509, 126
    %v561 = vpop.permute.xlu0 %560
    %562 = vrot.lane.b32.xlu0 %v515, 126
    %v563 = vpop.permute.xlu0 %562
    %564 = vrot.lane.b32.xlu0 %v499, 126
    %v565 = vpop.permute.xlu0 %564
    %566 = vrot.lane.b32.xlu0 %v505, 126
    %v567 = vpop.permute.xlu0 %566
    %568 = vrot.lane.b32.xlu0 %v511, 126
    %v569 = vpop.permute.xlu0 %568
    %570 = vrot.lane.b32.xlu0 %v517, 126
    %v571 = vpop.permute.xlu0 %570
    %vm572 = vcmp.lt.s32.totalorder %v171, 126
    %v573 = vsel %vm572, %v557, %v565
    %v574 = vsel %vm572, %v559, %v567
    %v575 = vsel %vm572, %v561, %v569
    %v576 = vsel %vm572, %v563, %v571
    %v577 = vsel %vm572, %v565, %v557
    %v578 = vsel %vm572, %v567, %v559
    %v579 = vsel %vm572, %v569, %v561
    %v580 = vsel %vm572, %v571, %v563
    %v581 = vsel %vm554, %v573, 0.0
    %v582 = vsel %vm555, %v577, 0.0
    %v583 = vsel %vm554, %v574, 0.0
    %v584 = vsel %vm555, %v578, 0.0
    %v585 = vsel %vm554, %v575, 0.0
    %v586 = vsel %vm555, %v579, 0.0
    %v587 = vsel %vm554, %v576, 0.0
    %v588 = vsel %vm555, %v580, 0.0
    %v589 = vld [vmem:[#allocation5 + $0x10] sm:$0xff]
    %v590 = vld [vmem:[#allocation5 + $0x50] sm:$0xff]
    %v591 = vld [vmem:[#allocation5 + $0x90] sm:$0xff]
    %v592 = vld [vmem:[#allocation5 + $0xd0] sm:$0xff]
    %593 = vset.pattern.permute.xlu0 2
    %594 = vperm.xlu0 %593, %v44
    %v595 = vpop.permute.xlu0 %594
    %597 = vset.pattern.permute.xlu0 2
    %598 = vperm.xlu0 %597, %v45
    %v599 = vpop.permute.xlu0 %598
    %601 = vset.pattern.permute.xlu0 2
    %602 = vperm.xlu0 %601, %v46
    %v603 = vpop.permute.xlu0 %602
    %605 = vset.pattern.permute.xlu0 2
    %606 = vperm.xlu0 %605, %v47
    %v607 = vpop.permute.xlu0 %606
    %v610 = vsel %vm287, %v589, 0
    %v613 = vsel %vm287, %v590, 0
    %v616 = vsel %vm287, %v591, 0
    %v619 = vsel %vm287, %v592, 0
    %621 = vmatprep.subr.mxu0 %v547
    %622 = vmatpush1.msra.mxu0 %v546
    %623 = vmatprep.subr.mxu0 %v549
    %624 = vmatpush1.msra.mxu0 %v548
    %625 = vmatprep.subr.mxu0 %v551
    %626 = vmatpush1.msra.mxu0 %v550
    %627 = vmatprep.subr.mxu0 %v553
    %628 = vmatpush1.msra.mxu0 %v552
    %629 = vmatprep.subr.mxu0 %v499
    %630 = vmatpush1.msra.mxu0 %v497
    %631 = vmatprep.subr.mxu0 %v505
    %632 = vmatpush1.msra.mxu0 %v503
    %633 = vmatprep.subr.mxu0 %v511
    %634 = vmatpush1.msra.mxu0 %v509
    %635 = vmatprep.subr.mxu0 %v517
    %636 = vmatpush1.msra.mxu0 %v515
    %637 = vmatprep.subr.mxu0 %v582
    %638 = vmatpush1.msra.mxu0 %v581
    %639 = vmatprep.subr.mxu0 %v584
    %640 = vmatpush1.msra.mxu0 %v583
    %641 = vmatprep.subr.mxu0 %v586
    %642 = vmatpush1.msra.mxu0 %v585
    %643 = vmatprep.subr.mxu0 %v588
    %644 = vmatpush1.msra.mxu0 %v587
    %645 = vmatprep.subr.mxu0 0.0
    %646 = vmatpush1.msra.mxu0 0.0
    %647 = vmatprep.subr.mxu0 0.0
    %648 = vmatpush1.msra.mxu0 0.0
    %649 = vmatprep.subr.mxu0 0.0
    %650 = vmatpush1.msra.mxu0 0.0
    %651 = vmatprep.subr.mxu0 0.0
    %652 = vmatpush1.msra.mxu0 0.0
    %653 = vmatprep.subr.mxu0 0.0
    %654 = vmatpush1.msra.mxu0 0.0
    %655 = vmatprep.subr.mxu0 0.0
    %656 = vmatpush1.msra.mxu0 0.0
    %657 = vmatprep.subr.mxu0 0.0
    %658 = vmatpush1.msra.mxu0 0.0
    %659 = vmatprep.subr.mxu0 0.0
    %660 = vmatpush1.msra.mxu0 0.0
    %661 = vmatprep.subr.mxu0 0.0
    %662 = vmatpush1.msra.mxu0 0.0
    %663 = vmatprep.subr.mxu0 0.0
    %664 = vmatpush1.msra.mxu0 0.0
    %665 = vmatprep.subr.mxu0 0.0
    %666 = vmatpush1.msra.mxu0 0.0
    %667 = vmatprep.subr.mxu0 0.0
    %668 = vmatpush1.msra.mxu0 0.0
    %669 = vmatprep.subr.mxu0 0.0
    %670 = vmatpush1.msra.mxu0 0.0
    %671 = vmatprep.subr.mxu0 0.0
    %672 = vmatpush1.msra.mxu0 0.0
    %673 = vmatprep.subr.mxu0 0.0
    %674 = vmatpush1.msra.mxu0 0.0
    %675 = vmatprep.subr.mxu0 0.0
    %676 = vmatpush1.msra.mxu0 0.0
    %677 = vmatprep.subr.mxu0 0.0
    %678 = vmatpush1.msra.mxu0 0.0
    %679 = vmatprep.subr.mxu0 0.0
    %680 = vmatpush1.msra.mxu0 0.0
    %681 = vmatprep.subr.mxu0 0.0
    %682 = vmatpush1.msra.mxu0 0.0
    %683 = vmatprep.subr.mxu0 0.0
    %684 = vmatpush1.msra.mxu0 0.0
    %685 = vmatprep.mubr.f32.mxu0 0.0
    %686 = vmatmul.mubr.f32.gmra.mrb[0].mxu0 %v610
    %v687 = vpop.f32.mrb[0].mxu0
    %v688 = vadd.f32 %v595, %v687
    %v689 = vpop.f32.mrb[0].mxu0
    %v690 = vadd.f32 %v595, %v689
    %691 = vmatprep.mubr.f32.mxu0 0.0
    %692 = vmatmul.mubr.f32.gmra.mrb[0].mxu0 %v613
    %v693 = vpop.f32.mrb[0].mxu0
    %v694 = vadd.f32 %v599, %v693
    %v695 = vpop.f32.mrb[0].mxu0
    %v696 = vadd.f32 %v599, %v695
    %697 = vmatprep.mubr.f32.mxu0 0.0
    %698 = vmatmul.mubr.f32.gmra.mrb[0].mxu0 %v616
    %v699 = vpop.f32.mrb[0].mxu0
    %v700 = vadd.f32 %v603, %v699
    %v701 = vpop.f32.mrb[0].mxu0
    %v702 = vadd.f32 %v603, %v701
    %703 = vmatprep.mubr.f32.mxu0 0.0
    %704 = vmatmul.mubr.f32.gmra.mrb[0].mxu0 %v619
    %v705 = vpop.f32.mrb[0].mxu0
    %v706 = vadd.f32 %v607, %v705
    %v707 = vpop.f32.mrb[0].mxu0
    %v708 = vadd.f32 %v607, %v707
    %709 = vdwg.mxu0
    %v710 = vmax.f32 %v688, 0.0
    %v711 = vmax.f32 %v690, 0.0
    %v712 = vmax.f32 %v694, 0.0
    %v713 = vmax.f32 %v696, 0.0
    %v714 = vmax.f32 %v700, 0.0
    %v715 = vmax.f32 %v702, 0.0
    %v716 = vmax.f32 %v706, 0.0
    %v717 = vmax.f32 %v708, 0.0
    %v718 = vld [vmem:[#allocation5 + $0x28] sm:$0xff]
    %v719 = vld [vmem:[#allocation5 + $0x68] sm:$0xff]
    %v720 = vld [vmem:[#allocation5 + $0xa8] sm:$0xff]
    %v721 = vld [vmem:[#allocation5 + $0xe8] sm:$0xff]
    %722 = vset.pattern.permute.xlu0 5
    %723 = vperm.xlu0 %722, %v44
    %v724 = vpop.permute.xlu0 %723
    %726 = vset.pattern.permute.xlu0 5
    %727 = vperm.xlu0 %726, %v45
    %v728 = vpop.permute.xlu0 %727
    %730 = vset.pattern.permute.xlu0 5
    %731 = vperm.xlu0 %730, %v46
    %v732 = vpop.permute.xlu0 %731
    %734 = vset.pattern.permute.xlu0 5
    %735 = vperm.xlu0 %734, %v47
    %v736 = vpop.permute.xlu0 %735
    %v739 = vsel %vm417, %v718, 0
    %v742 = vsel %vm417, %v719, 0
    %v745 = vsel %vm417, %v720, 0
    %v748 = vsel %vm417, %v721, 0
    %750 = vmatprep.subr.mxu0 %v711
    %751 = vmatpush1.msra.mxu0 %v710
    %752 = vmatprep.subr.mxu0 %v713
    %753 = vmatpush1.msra.mxu0 %v712
    %754 = vmatprep.subr.mxu0 %v715
    %755 = vmatpush1.msra.mxu0 %v714
    %756 = vmatprep.subr.mxu0 %v717
    %757 = vmatpush1.msra.mxu0 %v716
    %758 = vmatprep.subr.mxu0 0.0
    %759 = vmatpush1.msra.mxu0 0.0
    %760 = vmatprep.subr.mxu0 0.0
    %761 = vmatpush1.msra.mxu0 0.0
    %762 = vmatprep.subr.mxu0 0.0
    %763 = vmatpush1.msra.mxu0 0.0
    %764 = vmatprep.subr.mxu0 0.0
    %765 = vmatpush1.msra.mxu0 0.0
    %766 = vmatprep.subr.mxu0 0.0
    %767 = vmatpush1.msra.mxu0 0.0
    %768 = vmatprep.subr.mxu0 0.0
    %769 = vmatpush1.msra.mxu0 0.0
    %770 = vmatprep.subr.mxu0 0.0
    %771 = vmatpush1.msra.mxu0 0.0
    %772 = vmatprep.subr.mxu0 0.0
    %773 = vmatpush1.msra.mxu0 0.0
    %774 = vmatprep.subr.mxu0 0.0
    %775 = vmatpush1.msra.mxu0 0.0
    %776 = vmatprep.subr.mxu0 0.0
    %777 = vmatpush1.msra.mxu0 0.0
    %778 = vmatprep.subr.mxu0 0.0
    %779 = vmatpush1.msra.mxu0 0.0
    %780 = vmatprep.subr.mxu0 0.0
    %781 = vmatpush1.msra.mxu0 0.0
    %782 = vmatprep.subr.mxu0 0.0
    %783 = vmatpush1.msra.mxu0 0.0
    %784 = vmatprep.subr.mxu0 0.0
    %785 = vmatpush1.msra.mxu0 0.0
    %786 = vmatprep.subr.mxu0 0.0
    %787 = vmatpush1.msra.mxu0 0.0
    %788 = vmatprep.subr.mxu0 0.0
    %789 = vmatpush1.msra.mxu0 0.0
    %790 = vmatprep.subr.mxu0 0.0
    %791 = vmatpush1.msra.mxu0 0.0
    %792 = vmatprep.subr.mxu0 0.0
    %793 = vmatpush1.msra.mxu0 0.0
    %794 = vmatprep.subr.mxu0 0.0
    %795 = vmatpush1.msra.mxu0 0.0
    %796 = vmatprep.subr.mxu0 0.0
    %797 = vmatpush1.msra.mxu0 0.0
    %798 = vmatprep.subr.mxu0 0.0
    %799 = vmatpush1.msra.mxu0 0.0
    %800 = vmatprep.subr.mxu0 0.0
    %801 = vmatpush1.msra.mxu0 0.0
    %802 = vmatprep.subr.mxu0 0.0
    %803 = vmatpush1.msra.mxu0 0.0
    %804 = vmatprep.subr.mxu0 0.0
    %805 = vmatpush1.msra.mxu0 0.0
    %806 = vmatprep.subr.mxu0 0.0
    %807 = vmatpush1.msra.mxu0 0.0
    %808 = vmatprep.subr.mxu0 0.0
    %809 = vmatpush1.msra.mxu0 0.0
    %810 = vmatprep.subr.mxu0 0.0
    %811 = vmatpush1.msra.mxu0 0.0
    %812 = vmatprep.subr.mxu0 0.0
    %813 = vmatpush1.msra.mxu0 0.0
    %814 = vmatprep.mubr.f32.mxu0 0.0
    %815 = vmatmul.mubr.f32.gmra.mrb[0].mxu0 %v739
    %v816 = vpop.f32.mrb[0].mxu0
    %v817 = vadd.f32 %v724, %v816
    %v818 = vpop.f32.mrb[0].mxu0
    %v819 = vadd.f32 %v724, %v818
    %820 = vmatprep.mubr.f32.mxu0 0.0
    %821 = vmatmul.mubr.f32.gmra.mrb[0].mxu0 %v742
    %v822 = vpop.f32.mrb[0].mxu0
    %v823 = vadd.f32 %v728, %v822
    %v824 = vpop.f32.mrb[0].mxu0
    %v825 = vadd.f32 %v728, %v824
    %826 = vmatprep.mubr.f32.mxu0 0.0
    %827 = vmatmul.mubr.f32.gmra.mrb[0].mxu0 %v745
    %v828 = vpop.f32.mrb[0].mxu0
    %v829 = vadd.f32 %v732, %v828
    %v830 = vpop.f32.mrb[0].mxu0
    %v831 = vadd.f32 %v732, %v830
    %832 = vmatprep.mubr.f32.mxu0 0.0
    %833 = vmatmul.mubr.f32.gmra.mrb[0].mxu0 %v748
    %v834 = vpop.f32.mrb[0].mxu0
    %v835 = vadd.f32 %v736, %v834
    %v836 = vpop.f32.mrb[0].mxu0
    %v837 = vadd.f32 %v736, %v836
    %838 = vdwg.mxu0
    %vm839 = vcmp.ge.s32.totalorder %v195, 4
    %vm840 = vcmp.ge.s32.totalorder %v196, 4
    %841 = vrot.lane.b32.xlu0 %v817, 4
    %v842 = vpop.permute.xlu0 %841
    %843 = vrot.lane.b32.xlu0 %v823, 4
    %v844 = vpop.permute.xlu0 %843
    %845 = vrot.lane.b32.xlu0 %v829, 4
    %v846 = vpop.permute.xlu0 %845
    %847 = vrot.lane.b32.xlu0 %v835, 4
    %v848 = vpop.permute.xlu0 %847
    %849 = vrot.lane.b32.xlu0 %v819, 4
    %v850 = vpop.permute.xlu0 %849
    %851 = vrot.lane.b32.xlu0 %v825, 4
    %v852 = vpop.permute.xlu0 %851
    %853 = vrot.lane.b32.xlu0 %v831, 4
    %v854 = vpop.permute.xlu0 %853
    %855 = vrot.lane.b32.xlu0 %v837, 4
    %v856 = vpop.permute.xlu0 %855
    %vm857 = vcmp.lt.s32.totalorder %v171, 4
    %v858 = vsel %vm857, %v842, %v850
    %v859 = vsel %vm857, %v844, %v852
    %v860 = vsel %vm857, %v846, %v854
    %v861 = vsel %vm857, %v848, %v856
    %v862 = vsel %vm857, %v850, %v842
    %v863 = vsel %vm857, %v852, %v844
    %v864 = vsel %vm857, %v854, %v846
    %v865 = vsel %vm857, %v856, %v848
    %v866 = vsel %vm839, %v862, 0.0
    %v867 = vsel %vm840, %v858, 0.0
    %v868 = vsel %vm839, %v863, 0.0
    %v869 = vsel %vm840, %v859, 0.0
    %v870 = vsel %vm839, %v864, 0.0
    %v871 = vsel %vm840, %v860, 0.0
    %v872 = vsel %vm839, %v865, 0.0
    %v873 = vsel %vm840, %v861, 0.0
    %vm874 = vcmp.lt.s32.totalorder %v195, 124
    %vm875 = vcmp.lt.s32.totalorder %v196, 124
    %876 = vrot.lane.b32.xlu0 %v817, 124
    %v877 = vpop.permute.xlu0 %876
    %878 = vrot.lane.b32.xlu0 %v823, 124
    %v879 = vpop.permute.xlu0 %878
    %880 = vrot.lane.b32.xlu0 %v829, 124
    %v881 = vpop.permute.xlu0 %880
    %882 = vrot.lane.b32.xlu0 %v835, 124
    %v883 = vpop.permute.xlu0 %882
    %884 = vrot.lane.b32.xlu0 %v819, 124
    %v885 = vpop.permute.xlu0 %884
    %886 = vrot.lane.b32.xlu0 %v825, 124
    %v887 = vpop.permute.xlu0 %886
    %888 = vrot.lane.b32.xlu0 %v831, 124
    %v889 = vpop.permute.xlu0 %888
    %890 = vrot.lane.b32.xlu0 %v837, 124
    %v891 = vpop.permute.xlu0 %890
    %vm892 = vcmp.lt.s32.totalorder %v171, 124
    %v893 = vsel %vm892, %v877, %v885
    %v894 = vsel %vm892, %v879, %v887
    %v895 = vsel %vm892, %v881, %v889
    %v896 = vsel %vm892, %v883, %v891
    %v897 = vsel %vm892, %v885, %v877
    %v898 = vsel %vm892, %v887, %v879
    %v899 = vsel %vm892, %v889, %v881
    %v900 = vsel %vm892, %v891, %v883
    %v901 = vsel %vm874, %v893, 0.0
    %v902 = vsel %vm875, %v897, 0.0
    %v903 = vsel %vm874, %v894, 0.0
    %v904 = vsel %vm875, %v898, 0.0
    %v905 = vsel %vm874, %v895, 0.0
    %v906 = vsel %vm875, %v899, 0.0
    %v907 = vsel %vm874, %v896, 0.0
    %v908 = vsel %vm875, %v900, 0.0
    %v909 = vld [vmem:[#allocation5 + $0x18] sm:$0xff]
    %v910 = vld [vmem:[#allocation5 + $0x58] sm:$0xff]
    %v911 = vld [vmem:[#allocation5 + $0x98] sm:$0xff]
    %v912 = vld [vmem:[#allocation5 + $0xd8] sm:$0xff]
    %913 = vset.pattern.permute.xlu0 3
    %914 = vperm.xlu0 %913, %v44
    %v915 = vpop.permute.xlu0 %914
    %917 = vset.pattern.permute.xlu0 3
    %918 = vperm.xlu0 %917, %v45
    %v919 = vpop.permute.xlu0 %918
    %921 = vset.pattern.permute.xlu0 3
    %922 = vperm.xlu0 %921, %v46
    %v923 = vpop.permute.xlu0 %922
    %925 = vset.pattern.permute.xlu0 3
    %926 = vperm.xlu0 %925, %v47
    %v927 = vpop.permute.xlu0 %926
    %v930 = vsel %vm287, %v909, 0
    %v933 = vsel %vm287, %v910, 0
    %v936 = vsel %vm287, %v911, 0
    %v939 = vsel %vm287, %v912, 0
    %941 = vmatprep.subr.mxu0 %v867
    %942 = vmatpush1.msra.mxu0 %v866
    %943 = vmatprep.subr.mxu0 %v869
    %944 = vmatpush1.msra.mxu0 %v868
    %945 = vmatprep.subr.mxu0 %v871
    %946 = vmatpush1.msra.mxu0 %v870
    %947 = vmatprep.subr.mxu0 %v873
    %948 = vmatpush1.msra.mxu0 %v872
    %949 = vmatprep.subr.mxu0 %v819
    %950 = vmatpush1.msra.mxu0 %v817
    %951 = vmatprep.subr.mxu0 %v825
    %952 = vmatpush1.msra.mxu0 %v823
    %953 = vmatprep.subr.mxu0 %v831
    %954 = vmatpush1.msra.mxu0 %v829
    %955 = vmatprep.subr.mxu0 %v837
    %956 = vmatpush1.msra.mxu0 %v835
    %957 = vmatprep.subr.mxu0 %v902
    %958 = vmatpush1.msra.mxu0 %v901
    %959 = vmatprep.subr.mxu0 %v904
    %960 = vmatpush1.msra.mxu0 %v903
    %961 = vmatprep.subr.mxu0 %v906
    %962 = vmatpush1.msra.mxu0 %v905
    %963 = vmatprep.subr.mxu0 %v908
    %964 = vmatpush1.msra.mxu0 %v907
    %965 = vmatprep.subr.mxu0 0.0
    %966 = vmatpush1.msra.mxu0 0.0
    %967 = vmatprep.subr.mxu0 0.0
    %968 = vmatpush1.msra.mxu0 0.0
    %969 = vmatprep.subr.mxu0 0.0
    %970 = vmatpush1.msra.mxu0 0.0
    %971 = vmatprep.subr.mxu0 0.0
    %972 = vmatpush1.msra.mxu0 0.0
    %973 = vmatprep.subr.mxu0 0.0
    %974 = vmatpush1.msra.mxu0 0.0
    %975 = vmatprep.subr.mxu0 0.0
    %976 = vmatpush1.msra.mxu0 0.0
    %977 = vmatprep.subr.mxu0 0.0
    %978 = vmatpush1.msra.mxu0 0.0
    %979 = vmatprep.subr.mxu0 0.0
    %980 = vmatpush1.msra.mxu0 0.0
    %981 = vmatprep.subr.mxu0 0.0
    %982 = vmatpush1.msra.mxu0 0.0
    %983 = vmatprep.subr.mxu0 0.0
    %984 = vmatpush1.msra.mxu0 0.0
    %985 = vmatprep.subr.mxu0 0.0
    %986 = vmatpush1.msra.mxu0 0.0
    %987 = vmatprep.subr.mxu0 0.0
    %988 = vmatpush1.msra.mxu0 0.0
    %989 = vmatprep.subr.mxu0 0.0
    %990 = vmatpush1.msra.mxu0 0.0
    %991 = vmatprep.subr.mxu0 0.0
    %992 = vmatpush1.msra.mxu0 0.0
    %993 = vmatprep.subr.mxu0 0.0
    %994 = vmatpush1.msra.mxu0 0.0
    %995 = vmatprep.subr.mxu0 0.0
    %996 = vmatpush1.msra.mxu0 0.0
    %997 = vmatprep.subr.mxu0 0.0
    %998 = vmatpush1.msra.mxu0 0.0
    %999 = vmatprep.subr.mxu0 0.0
    %1000 = vmatpush1.msra.mxu0 0.0
    %1001 = vmatprep.subr.mxu0 0.0
    %1002 = vmatpush1.msra.mxu0 0.0
    %1003 = vmatprep.subr.mxu0 0.0
    %1004 = vmatpush1.msra.mxu0 0.0
    %1005 = vmatprep.mubr.f32.mxu0 0.0
    %1006 = vmatmul.mubr.f32.gmra.mrb[0].mxu0 %v930
    %v1007 = vpop.f32.mrb[0].mxu0
    %v1008 = vadd.f32 %v915, %v1007
    %v1009 = vpop.f32.mrb[0].mxu0
    %v1010 = vadd.f32 %v915, %v1009
    %1011 = vmatprep.mubr.f32.mxu0 0.0
    %1012 = vmatmul.mubr.f32.gmra.mrb[0].mxu0 %v933
    %v1013 = vpop.f32.mrb[0].mxu0
    %v1014 = vadd.f32 %v919, %v1013
    %v1015 = vpop.f32.mrb[0].mxu0
    %v1016 = vadd.f32 %v919, %v1015
    %1017 = vmatprep.mubr.f32.mxu0 0.0
    %1018 = vmatmul.mubr.f32.gmra.mrb[0].mxu0 %v936
    %v1019 = vpop.f32.mrb[0].mxu0
    %v1020 = vadd.f32 %v923, %v1019
    %v1021 = vpop.f32.mrb[0].mxu0
    %v1022 = vadd.f32 %v923, %v1021
    %1023 = vmatprep.mubr.f32.mxu0 0.0
    %1024 = vmatmul.mubr.f32.gmra.mrb[0].mxu0 %v939
    %v1025 = vpop.f32.mrb[0].mxu0
    %v1026 = vadd.f32 %v927, %v1025
    %v1027 = vpop.f32.mrb[0].mxu0
    %v1028 = vadd.f32 %v927, %v1027
    %1029 = vdwg.mxu0
    %v1030 = vmax.f32 %v1008, 0.0
    %v1031 = vmax.f32 %v1010, 0.0
    %v1032 = vmax.f32 %v1014, 0.0
    %v1033 = vmax.f32 %v1016, 0.0
    %v1034 = vmax.f32 %v1020, 0.0
    %v1035 = vmax.f32 %v1022, 0.0
    %v1036 = vmax.f32 %v1026, 0.0
    %v1037 = vmax.f32 %v1028, 0.0
    %v1038 = vld [vmem:[#allocation5 + $0x30] sm:$0xf]
    %v1039 = vld [vmem:[#allocation5 + $0x38] sm:$0xf]
    %1041 = vset.pattern.permute.xlu0 6
    %1042 = vperm.xlu0 %1041, %v1039
    %v1043 = vpop.permute.xlu0 %1042
    %v1046 = vsel %vm417, %v1038, 0
    %1048 = vmatprep.subr.mxu0 %v1031
    %1049 = vmatpush1.msra.mxu0 %v1030
    %1050 = vmatprep.subr.mxu0 %v1033
    %1051 = vmatpush1.msra.mxu0 %v1032
    %1052 = vmatprep.subr.mxu0 %v1035
    %1053 = vmatpush1.msra.mxu0 %v1034
    %1054 = vmatprep.subr.mxu0 %v1037
    %1055 = vmatpush1.msra.mxu0 %v1036
    %1056 = vmatprep.subr.mxu0 0.0
    %1057 = vmatpush1.msra.mxu0 0.0
    %1058 = vmatprep.subr.mxu0 0.0
    %1059 = vmatpush1.msra.mxu0 0.0
    %1060 = vmatprep.subr.mxu0 0.0
    %1061 = vmatpush1.msra.mxu0 0.0
    %1062 = vmatprep.subr.mxu0 0.0
    %1063 = vmatpush1.msra.mxu0 0.0
    %1064 = vmatprep.subr.mxu0 0.0
    %1065 = vmatpush1.msra.mxu0 0.0
    %1066 = vmatprep.subr.mxu0 0.0
    %1067 = vmatpush1.msra.mxu0 0.0
    %1068 = vmatprep.subr.mxu0 0.0
    %1069 = vmatpush1.msra.mxu0 0.0
    %1070 = vmatprep.subr.mxu0 0.0
    %1071 = vmatpush1.msra.mxu0 0.0
    %1072 = vmatprep.subr.mxu0 0.0
    %1073 = vmatpush1.msra.mxu0 0.0
    %1074 = vmatprep.subr.mxu0 0.0
    %1075 = vmatpush1.msra.mxu0 0.0
    %1076 = vmatprep.subr.mxu0 0.0
    %1077 = vmatpush1.msra.mxu0 0.0
    %1078 = vmatprep.subr.mxu0 0.0
    %1079 = vmatpush1.msra.mxu0 0.0
    %1080 = vmatprep.subr.mxu0 0.0
    %1081 = vmatpush1.msra.mxu0 0.0
    %1082 = vmatprep.subr.mxu0 0.0
    %1083 = vmatpush1.msra.mxu0 0.0
    %1084 = vmatprep.subr.mxu0 0.0
    %1085 = vmatpush1.msra.mxu0 0.0
    %1086 = vmatprep.subr.mxu0 0.0
    %1087 = vmatpush1.msra.mxu0 0.0
    %1088 = vmatprep.subr.mxu0 0.0
    %1089 = vmatpush1.msra.mxu0 0.0
    %1090 = vmatprep.subr.mxu0 0.0
    %1091 = vmatpush1.msra.mxu0 0.0
    %1092 = vmatprep.subr.mxu0 0.0
    %1093 = vmatpush1.msra.mxu0 0.0
    %1094 = vmatprep.subr.mxu0 0.0
    %1095 = vmatpush1.msra.mxu0 0.0
    %1096 = vmatprep.subr.mxu0 0.0
    %1097 = vmatpush1.msra.mxu0 0.0
    %1098 = vmatprep.subr.mxu0 0.0
    %1099 = vmatpush1.msra.mxu0 0.0
    %1100 = vmatprep.subr.mxu0 0.0
    %1101 = vmatpush1.msra.mxu0 0.0
    %1102 = vmatprep.subr.mxu0 0.0
    %1103 = vmatpush1.msra.mxu0 0.0
    %1104 = vmatprep.subr.mxu0 0.0
    %1105 = vmatpush1.msra.mxu0 0.0
    %1106 = vmatprep.subr.mxu0 0.0
    %1107 = vmatpush1.msra.mxu0 0.0
    %1108 = vmatprep.subr.mxu0 0.0
    %1109 = vmatpush1.msra.mxu0 0.0
    %1110 = vmatprep.subr.mxu0 0.0
    %1111 = vmatpush1.msra.mxu0 0.0
    %1112 = vmatprep.mubr.f32.mxu0 0.0
    %1113 = vmatmul.mubr.f32.gmra.mrb[0].mxu0 %v1046
    %v1114 = vpop.f32.mrb[0].mxu0
    %v1115 = vadd.f32 %v1043, %v1114
    %v1116 = vpop.f32.mrb[0].mxu0
    %v1117 = vadd.f32 %v1043, %v1116
    %1118 = vdwg.mxu0
    %v1121 = vcombine.low %v1115, %v1117
    %1123 = vst [vmem:[#allocation7] sm:$0xff] %v1121
    // Predicated region
    $region18: #{single_stage_model_pallas.1} parent=1 // pred_check
      _
    $region19: #{single_stage_model_pallas.1} parent=1 // pred_check_branch
      %1125 = sbr.rel (0) target = $region21
    $region20: #{single_stage_model_pallas.1} parent=1 // pred_region
      %s1127 = ssub.s32 128, 128
      %1128 = vsyncadd [#allocation4], %s1127
      %s1130 = sshll.u32 [#allocation7], 4
      %s1131 = int_to_ptr.vmem [resolvable:$true] %s1130
      %1133 = dma.vmem_to_hbm [thread:$0]  %s1131, 128, %s2, [#allocation4]
    $region21: #{single_stage_model_pallas.1} parent=1 // pred_fallthru
      _
    // Predicated region
    $region22: #{single_stage_model_pallas.1} parent=1 // pred_check
      _
    $region23: #{single_stage_model_pallas.1} parent=1 // pred_check_branch
      %1135 = sbr.rel (0) target = $region25
    $region24: #{single_stage_model_pallas.1} parent=1 // pred_region
      %1136 = dma.done [#allocation4], 128
    $region25: #{single_stage_model_pallas.1} parent=1 // pred_fallthru
      _
    %1137 = vsyncpa [#allocation3], 1
    %1138 = vsyncpa [#allocation6], 1
    %1139 = vsyncpa [#allocation4], 1

</llo_original>
